<compile_context>
chip_gen: v7x
topology: tpu7x:2x2x1
jax: 0.10.0
libtpu: 0.0.40
codegen_flags: <defaults>
</compile_context>

<pallas_src>
import jax
import jax.numpy as jnp
from jax import lax
from jax.experimental import pallas as pl
from jax.experimental.pallas import tpu as pltpu


# dot_general dimension-number forms (same idioms as the reference flash-attention
# Pallas kernels): "NT" = lhs @ rhs^T, "TN" = lhs^T @ rhs.
_NT_DIMS = (((1,), (1,)), ((), ()))
_TN_DIMS = (((0,), (0,)), ((), ()))


def decoder_c_kernel(x_ref, w1_ref, b1_ref, w2t_ref, b2_ref, o_ref):
    """One (block_b, F) batch tile; compute is feature-major internally."""
    xb = x_ref[...].astype(w1_ref.dtype)                       # (block_b, F) -> bf16
    # Linear 1, feature-major: h^T = W1 @ x^T + b1   ("NT" MXU form, f32 accumulate).
    hT = lax.dot_general(w1_ref[...], xb, _NT_DIMS,
                         preferred_element_type=jnp.float32) + b1_ref[...]
    # Dropout(0.5): identity in eval mode.
    # TODO(synk): training-mode dropout (pltpu.prng_seed / prng_random_bits) omitted;
    #             eval semantics used.
    # Tanhshrink in f32, lane-dense over the batch axis (full VPU/EUP lane util).
    t = hT - jnp.tanh(hT)                                       # (F, block_b) f32
    # Linear 2 straight back to row-major: y = t^T @ W2^T   ("TN" MXU form).
    y = lax.dot_general(t.astype(w2t_ref.dtype), w2t_ref[...], _TN_DIMS,
                        preferred_element_type=jnp.float32)     # (block_b, F)
    o_ref[...] = (y + b2_ref[...]).astype(o_ref.dtype)


def prepare_params(w1, b1, w2, b2, compute_dtype=jnp.bfloat16):
    """One-time parameter prep (hoisted out of the per-call path).

    PyTorch nn.Linear weights are (out, in). W1 is used as-is by the NT form;
    W2 is transposed once host-side for the TN form. Biases stay f32:
    b1 as an (F, 1) column (broadcast over lanes), b2 as a (1, F) row.
    """
    F = w1.shape[0]
    return (w1.astype(compute_dtype),                 # (F_out, F_in)
            b1.reshape(F, 1).astype(jnp.float32),
            jnp.transpose(w2).astype(compute_dtype),  # (F_in, F_out)
            b2.reshape(1, F).astype(jnp.float32))


def _choose_block_b(B):
    # Large batch tiles (multiple of 8 sublanes), but keep >=2 grid steps when the
    # batch allows so the "parallel" axis can shard across the 2 TensorCores on v7x.
    for cand in (512, 256, 128):
        if B % cand == 0 and B // cand >= 2:
            return cand
    return B  # small / ragged batch: single full-extent block (always legal)


def decoder_c_forward(x, params, *, block_b=None):
    """x: (B, F) float32. params: output of prepare_params. Returns (B, F)."""
    w1c, b1c, w2tc, b2c = params
    B, F = x.shape
    if block_b is None:
        block_b = _choose_block_b(B)
    assert B % block_b == 0 and (block_b == B or block_b % 8 == 0)

    wbytes = jnp.dtype(w1c.dtype).itemsize
    cost = pl.CostEstimate(
        flops=2 * 2 * B * F * F,                        # two (F,F) x (F,B) matmuls
        transcendentals=B * F,                          # tanh
        bytes_accessed=2 * B * F * 4 + 2 * F * F * wbytes + 2 * F * 4,
    )

    # TODO(synk): if F grows well beyond 32 (e.g. >=2048), add a K grid axis + VMEM
    # accumulator instead of holding both full (F,F) weights resident (relevant for
    # v7x's 64 MiB VMEM). At F=32 the whole working set is a few hundred KiB.
    return pl.pallas_call(
        decoder_c_kernel,
        out_shape=jax.ShapeDtypeStruct((B, F), x.dtype),
        grid_spec=pltpu.PrefetchScalarGridSpec(
            num_scalar_prefetch=0,
            grid=(B // block_b,),
            in_specs=[
                pl.BlockSpec((block_b, F), lambda i: (i, 0)),  # x batch tile
                pl.BlockSpec((F, F), lambda i: (0, 0)),        # W1 (resident)
                pl.BlockSpec((F, 1), lambda i: (0, 0)),        # b1 column
                pl.BlockSpec((F, F), lambda i: (0, 0)),        # W2^T (resident)
                pl.BlockSpec((1, F), lambda i: (0, 0)),        # b2 row
            ],
            out_specs=pl.BlockSpec((block_b, F), lambda i: (i, 0)),
        ),
        compiler_params=pltpu.CompilerParams(
            dimension_semantics=("parallel",),
        ),
        cost_estimate=cost,
    )(x, w1c, b1c, w2tc, b2c)


def _orthogonal(key, n, gain=1.0):
    """Deterministic orthogonal init (matches nn.init.orthogonal_ semantics)."""
    a = jax.random.normal(key, (n, n), dtype=jnp.float32)
    q, r = jnp.linalg.qr(a)
    q = q * jnp.sign(jnp.diag(r))
    return gain * q


def reference_forward(x, w1, b1, w2, b2):
    h = x @ w1.T + b1
    t = h - jnp.tanh(h)
    return t @ w2.T + b2


def reference_forward_bf16(x, w1, b1, w2, b2):
    """Emulates the kernel numerics: bf16 matmul inputs, f32 accumulate, f32 tanh."""
    xb, w1b, w2b = (a.astype(jnp.bfloat16) for a in (x, w1, w2))
    h = jnp.dot(xb, w1b.T, preferred_element_type=jnp.float32) + b1
    t = h - jnp.tanh(h)
    return jnp.dot(t.astype(jnp.bfloat16), w2b.T, preferred_element_type=jnp.float32) + b2


if __name__ == "__main__":
    num_inputs = 32   # F
    batch = 256       # small demo batch -> two lane-dense 128-row tiles

    key = jax.random.PRNGKey(0)
    k_x, k_w1, k_w2 = jax.random.split(key, 3)

    x = jax.random.normal(k_x, (batch, num_inputs), dtype=jnp.float32)

    # init_weights(): orthogonal Linear weights (gain=1), zero biases.
    w1 = _orthogonal(k_w1, num_inputs)
    b1 = jnp.zeros((num_inputs,), dtype=jnp.float32)
    w2 = _orthogonal(k_w2, num_inputs)
    b2 = jnp.zeros((num_inputs,), dtype=jnp.float32)

    # One-time parameter prep (hoisted out of the per-call path).
    params = prepare_params(w1, b1, w2, b2, compute_dtype=jnp.bfloat16)

    fwd = jax.jit(decoder_c_forward)
    out = jax.block_until_ready(fwd(x, params))
    assert out.shape == (batch, num_inputs)

    # Tight check vs a reference using the same bf16-in / f32-accumulate numerics.
    ref_bf16 = reference_forward_bf16(x, w1, b1, w2, b2)
    assert jnp.allclose(out, ref_bf16, atol=2e-2, rtol=2e-2), \
        "mismatch vs bf16-emulated reference"

    # Loose sanity check vs the full-f32 reference (bf16 rounding only).
    ref_f32 = reference_forward(x, w1, b1, w2, b2)
    assert jnp.allclose(out, ref_f32, atol=1e-1, rtol=1e-1), \
        "mismatch vs f32 reference"

    print("KERNEL_OK")
</pallas_src>

<mosaic_0001>
module attributes {stable_mosaic.version = 11 : i64} {
  func.func @decoder_c_kernel(%arg0: i32, %arg1: memref<128x32xf32, #tpu.memory_space<vmem>>, %arg2: memref<32x32xbf16, #tpu.memory_space<vmem>>, %arg3: memref<32x1xf32, #tpu.memory_space<vmem>>, %arg4: memref<32x32xbf16, #tpu.memory_space<vmem>>, %arg5: memref<1x32xf32, #tpu.memory_space<vmem>>, %arg6: memref<128x32xf32, #tpu.memory_space<vmem>>) attributes {dimension_semantics = [#tpu.dimension_semantics<parallel>], iteration_bounds = array<i64: 2>, scalar_prefetch = 0 : i64, scratch_operands = 0 : i64, tpu.core_type = #tpu.core_type<tc>, window_params = [{transform_indices = @transform_0, window_bounds = array<i64: 128, 32>}, {pipeline_mode = #tpu.pipeline_mode<synchronous>, transform_indices = @transform_1, window_bounds = array<i64: 32, 32>}, {pipeline_mode = #tpu.pipeline_mode<synchronous>, transform_indices = @transform_2, window_bounds = array<i64: 32, 1>}, {pipeline_mode = #tpu.pipeline_mode<synchronous>, transform_indices = @transform_3, window_bounds = array<i64: 32, 32>}, {pipeline_mode = #tpu.pipeline_mode<synchronous>, transform_indices = @transform_4, window_bounds = array<i64: 1, 32>}, {transform_indices = @transform_5, window_bounds = array<i64: 128, 32>}]} {
    %c0 = arith.constant 0 : index
    %c0_0 = arith.constant 0 : index
    %0 = vector.load %arg1[%c0, %c0_0] : memref<128x32xf32, #tpu.memory_space<vmem>>, vector<128x32xf32>
    %1 = arith.truncf %0 : vector<128x32xf32> to vector<128x32xbf16>
    %c0_1 = arith.constant 0 : index
    %c0_2 = arith.constant 0 : index
    %2 = vector.load %arg2[%c0_1, %c0_2] : memref<32x32xbf16, #tpu.memory_space<vmem>>, vector<32x32xbf16>
    %cst = arith.constant dense<0.000000e+00> : vector<32x128xf32>
    %3 = tpu.matmul %2, %1, %cst {dimension_numbers = #tpu.dot_dimension_numbers<[1], [1], [0], [0], [0, 0, 1, 0], [], []>} : vector<32x32xbf16>, vector<128x32xbf16>, vector<32x128xf32> -> vector<32x128xf32>
    %c0_3 = arith.constant 0 : index
    %c0_4 = arith.constant 0 : index
    %4 = vector.load %arg3[%c0_3, %c0_4] : memref<32x1xf32, #tpu.memory_space<vmem>>, vector<32x1xf32>
    %5 = vector.broadcast %4 : vector<32x1xf32> to vector<32x128xf32>
    %6 = arith.addf %3, %5 : vector<32x128xf32>
    %7 = math.tanh %6 : vector<32x128xf32>
    %8 = arith.subf %6, %7 : vector<32x128xf32>
    %9 = arith.truncf %8 : vector<32x128xf32> to vector<32x128xbf16>
    %c0_5 = arith.constant 0 : index
    %c0_6 = arith.constant 0 : index
    %10 = vector.load %arg4[%c0_5, %c0_6] : memref<32x32xbf16, #tpu.memory_space<vmem>>, vector<32x32xbf16>
    %cst_7 = arith.constant dense<0.000000e+00> : vector<128x32xf32>
    %11 = tpu.matmul %9, %10, %cst_7 {dimension_numbers = #tpu.dot_dimension_numbers<[0], [0], [1], [1], [0, 1, 1, 1], [], []>} : vector<32x128xbf16>, vector<32x32xbf16>, vector<128x32xf32> -> vector<128x32xf32>
    %c0_8 = arith.constant 0 : index
    %c0_9 = arith.constant 0 : index
    %12 = vector.load %arg5[%c0_8, %c0_9] : memref<1x32xf32, #tpu.memory_space<vmem>>, vector<1x32xf32>
    %13 = vector.broadcast %12 : vector<1x32xf32> to vector<128x32xf32>
    %14 = arith.addf %11, %13 : vector<128x32xf32>
    %c0_10 = arith.constant 0 : index
    %c0_11 = arith.constant 0 : index
    %15 = vector.load %arg6[%c0_10, %c0_11] : memref<128x32xf32, #tpu.memory_space<vmem>>, vector<128x32xf32>
    tpu.vector_store %arg6[%c0_10, %c0_11], %14 {strides = array<i32>} : memref<128x32xf32, #tpu.memory_space<vmem>>, vector<128x32xf32>,
    return
  }
  func.func @transform_0(%arg0: i32) -> (i32, i32) {
    %c0_i32 = arith.constant 0 : i32
    %c0_i32_0 = arith.constant 0 : i32
    return %arg0, %c0_i32 : i32, i32
  }
  func.func @transform_1(%arg0: i32) -> (i32, i32) {
    %c0_i32 = arith.constant 0 : i32
    %c0_i32_0 = arith.constant 0 : i32
    %c0_i32_1 = arith.constant 0 : i32
    return %c0_i32, %c0_i32_0 : i32, i32
  }
  func.func @transform_2(%arg0: i32) -> (i32, i32) {
    %c0_i32 = arith.constant 0 : i32
    %c0_i32_0 = arith.constant 0 : i32
    %c0_i32_1 = arith.constant 0 : i32
    return %c0_i32, %c0_i32_0 : i32, i32
  }
  func.func @transform_3(%arg0: i32) -> (i32, i32) {
    %c0_i32 = arith.constant 0 : i32
    %c0_i32_0 = arith.constant 0 : i32
    %c0_i32_1 = arith.constant 0 : i32
    return %c0_i32, %c0_i32_0 : i32, i32
  }
  func.func @transform_4(%arg0: i32) -> (i32, i32) {
    %c0_i32 = arith.constant 0 : i32
    %c0_i32_0 = arith.constant 0 : i32
    %c0_i32_1 = arith.constant 0 : i32
    return %c0_i32, %c0_i32_0 : i32, i32
  }
  func.func @transform_5(%arg0: i32) -> (i32, i32) {
    %c0_i32 = arith.constant 0 : i32
    %c0_i32_0 = arith.constant 0 : i32
    return %arg0, %c0_i32 : i32, i32
  }
}

</mosaic_0001>

<llo_original>
// kernel: decoder_c_forward.1
$region0: #{decoder_c_forward.1}
  #allocation0 [shape = 'u32[]', space=smem, size = 0x4, offset = 0x4, fixed_abs, tag = 'smem constant byte address 0x4 - core index']
  #allocation1 [shape = 'u32[144,128]{1,0:T(1,128)}', space=vmem, size = 0x12000, scoped, tag = 'internal scratch']
  %s0 = inlined_call_operand.vmem [shape: f32[256,32], index: 0, kind: input, shape index: {}]
  %s1 = inlined_call_operand.vmem [shape: bf16[32,32], index: 1, kind: input, shape index: {}]
  %s2 = inlined_call_operand.vmem [shape: f32[32,1], index: 2, kind: input, shape index: {}]
  %s3 = inlined_call_operand.vmem [shape: bf16[32,32], index: 3, kind: input, shape index: {}]
  %s4 = inlined_call_operand.vmem [shape: f32[1,32], index: 4, kind: input, shape index: {}]
  %s5 = inlined_call_operand.vmem [shape: f32[256,32], index: 5, kind: output, shape index: {}]
  %s6 = sld [smem:[#allocation0]]
  $region53: #{decoder_c_forward.1} parent=0
    _
  %s8 = ssub.s32 1, %s6
  %s9 = scalar_select 0, %s8, %s6
  loop: start=0, step=1, limit=4
  $region2: #{decoder_c_forward.1} parent=0 // loop_pre_header
    _
  $region3: #{decoder_c_forward.1} parent=0 // loop_header
    %s11 = sphi 0, %s15
    %p12 = scmp.ge.s32.totalorder %s11, 4
    %s21 = sphi 0, %s23
    %s24 = sphi 0, %s21
    %s25 = sphi 0, %s24
    %s41 = sphi 0, %s25
    %s45 = sphi 0, %s45
    %s47 = sphi 0, %s45
    %s48 = sphi 0, %s47
    %s62 = sphi 0, %s48
    %s66 = sphi 0, %s66
    %s68 = sphi 0, %s66
    %s69 = sphi 0, %s68
    %s83 = sphi 0, %s69
    %s87 = sphi 0, %s87
    %s89 = sphi 0, %s87
    %s90 = sphi 0, %s89
    %s104 = sphi 0, %s90
    %s108 = sphi 0, %s108
    %s110 = sphi 0, %s108
    %s111 = sphi 0, %s110
    %s125 = sphi 0, %s111
    %s131 = sphi 0, %s133
    %s134 = sphi 0, %s131
    %s135 = sphi 0, %s134
    %s151 = sphi 0, %s135
  $region4: #{decoder_c_forward.1} parent=0 // loop_header_branch
    %14 = sbr.rel (%p12) target = $region8
  $region5: #{decoder_c_forward.1} parent=0 // loop_body
    %s16 = ssub.s32 %s11, 1
    %s17 = ssub.s32 %s11, 2
    %s18 = sadd.s32 %s11, 1
    %s19 = ssub.s32 %s11, %s18
    %p20 = scmp.eq.s32.totalorder %s19, 0
    %s22 = sadd.s32 %s21, 1
    %s23 = scalar_select %p20, %s21, %s22
    %p26 = pneg %p20
    %p27 = scmp.eq.s32.totalorder %s11, 1
    %p28 = por %p26, %p27
    %p29 = scmp.ne.s32.totalorder %s21, %s24
    %p30 = scmp.eq.s32.totalorder %s11, 0
    %p31 = por %p29, %p30
    %p32 = scmp.ne.s32.totalorder %s21, %s24
    %p33 = scmp.eq.s32.totalorder %s16, 1
    %p34 = por %p32, %p33
    %p35 = scmp.ne.s32.totalorder %s24, %s25
    %p36 = scmp.eq.s32.totalorder %s16, 0
    %p37 = por %p35, %p36
    %p38 = scmp.ne.s32.totalorder %s24, %s25
    %p39 = scmp.eq.s32.totalorder %s17, 1
    %p40 = por %p38, %p39
    %p42 = scmp.ne.s32.totalorder %s25, %s41
    %p43 = scmp.eq.s32.totalorder %s17, 0
    %p44 = por %p42, %p43
    %s46 = sadd.s32 %s45, 1
    %p49 = scmp.eq.s32.totalorder %s11, 1
    %p50 = scmp.ne.s32.totalorder %s45, %s47
    %p51 = scmp.eq.s32.totalorder %s11, 0
    %p52 = por %p50, %p51
    %p53 = scmp.ne.s32.totalorder %s45, %s47
    %p54 = scmp.eq.s32.totalorder %s16, 1
    %p55 = por %p53, %p54
    %p56 = scmp.ne.s32.totalorder %s47, %s48
    %p57 = scmp.eq.s32.totalorder %s16, 0
    %p58 = por %p56, %p57
    %p59 = scmp.ne.s32.totalorder %s47, %s48
    %p60 = scmp.eq.s32.totalorder %s17, 1
    %p61 = por %p59, %p60
    %p63 = scmp.ne.s32.totalorder %s48, %s62
    %p64 = scmp.eq.s32.totalorder %s17, 0
    %p65 = por %p63, %p64
    %s67 = sadd.s32 %s66, 1
    %p70 = scmp.eq.s32.totalorder %s11, 1
    %p71 = scmp.ne.s32.totalorder %s66, %s68
    %p72 = scmp.eq.s32.totalorder %s11, 0
    %p73 = por %p71, %p72
    %p74 = scmp.ne.s32.totalorder %s66, %s68
    %p75 = scmp.eq.s32.totalorder %s16, 1
    %p76 = por %p74, %p75
    %p77 = scmp.ne.s32.totalorder %s68, %s69
    %p78 = scmp.eq.s32.totalorder %s16, 0
    %p79 = por %p77, %p78
    %p80 = scmp.ne.s32.totalorder %s68, %s69
    %p81 = scmp.eq.s32.totalorder %s17, 1
    %p82 = por %p80, %p81
    %p84 = scmp.ne.s32.totalorder %s69, %s83
    %p85 = scmp.eq.s32.totalorder %s17, 0
    %p86 = por %p84, %p85
    %s88 = sadd.s32 %s87, 1
    %p91 = scmp.eq.s32.totalorder %s11, 1
    %p92 = scmp.ne.s32.totalorder %s87, %s89
    %p93 = scmp.eq.s32.totalorder %s11, 0
    %p94 = por %p92, %p93
    %p95 = scmp.ne.s32.totalorder %s87, %s89
    %p96 = scmp.eq.s32.totalorder %s16, 1
    %p97 = por %p95, %p96
    %p98 = scmp.ne.s32.totalorder %s89, %s90
    %p99 = scmp.eq.s32.totalorder %s16, 0
    %p100 = por %p98, %p99
    %p101 = scmp.ne.s32.totalorder %s89, %s90
    %p102 = scmp.eq.s32.totalorder %s17, 1
    %p103 = por %p101, %p102
    %p105 = scmp.ne.s32.totalorder %s90, %s104
    %p106 = scmp.eq.s32.totalorder %s17, 0
    %p107 = por %p105, %p106
    %s109 = sadd.s32 %s108, 1
    %p112 = scmp.eq.s32.totalorder %s11, 1
    %p113 = scmp.ne.s32.totalorder %s108, %s110
    %p114 = scmp.eq.s32.totalorder %s11, 0
    %p115 = por %p113, %p114
    %p116 = scmp.ne.s32.totalorder %s108, %s110
    %p117 = scmp.eq.s32.totalorder %s16, 1
    %p118 = por %p116, %p117
    %p119 = scmp.ne.s32.totalorder %s110, %s111
    %p120 = scmp.eq.s32.totalorder %s16, 0
    %p121 = por %p119, %p120
    %p122 = scmp.ne.s32.totalorder %s110, %s111
    %p123 = scmp.eq.s32.totalorder %s17, 1
    %p124 = por %p122, %p123
    %p126 = scmp.ne.s32.totalorder %s111, %s125
    %p127 = scmp.eq.s32.totalorder %s17, 0
    %p128 = por %p126, %p127
    %s129 = ssub.s32 %s11, %s18
    %p130 = scmp.eq.s32.totalorder %s129, 0
    %s132 = sadd.s32 %s131, 1
    %s133 = scalar_select %p130, %s131, %s132
    %p136 = pneg %p130
    %p137 = scmp.eq.s32.totalorder %s11, 1
    %p138 = por %p136, %p137
    %p139 = scmp.ne.s32.totalorder %s131, %s134
    %p140 = scmp.eq.s32.totalorder %s11, 0
    %p141 = por %p139, %p140
    %p142 = scmp.ne.s32.totalorder %s131, %s134
    %p143 = scmp.eq.s32.totalorder %s16, 1
    %p144 = por %p142, %p143
    %p145 = scmp.ne.s32.totalorder %s134, %s135
    %p146 = scmp.eq.s32.totalorder %s16, 0
    %p147 = por %p145, %p146
    %p148 = scmp.ne.s32.totalorder %s134, %s135
    %p149 = scmp.eq.s32.totalorder %s17, 1
    %p150 = por %p148, %p149
    %p152 = scmp.ne.s32.totalorder %s135, %s151
    %p153 = scmp.eq.s32.totalorder %s17, 0
    %p154 = por %p152, %p153
    %p155 = scmp.le.s32.totalorder 1, %s11
    %p156 = scmp.lt.s32.totalorder %s11, 3
    %p157 = pnand %p155, %p156
    %p158 = pneg %p157
    // Predicated region
    $region9: #{decoder_c_forward.1} parent=5 // pred_check
      _
    $region10: #{decoder_c_forward.1} parent=5 // pred_check_branch
      %160 = sbr.rel (%p157) target = $region12
    $region11: #{decoder_c_forward.1} parent=5 // pred_region
      %s161 = ssub.s32 %s11, 1
      // Predicated region
      $region13: #{decoder_c_forward.1} parent=11 // pred_check
        %p162 = pneg %p58
      $region14: #{decoder_c_forward.1} parent=11 // pred_check_branch
        %164 = sbr.rel (%p162) target = $region16
      $region15: #{decoder_c_forward.1} parent=11 // pred_region
        _
      $region16: #{decoder_c_forward.1} parent=11 // pred_fallthru
        _
      // Predicated region
      $region17: #{decoder_c_forward.1} parent=11 // pred_check
        %p165 = pneg %p79
      $region18: #{decoder_c_forward.1} parent=11 // pred_check_branch
        %167 = sbr.rel (%p165) target = $region20
      $region19: #{decoder_c_forward.1} parent=11 // pred_region
        _
      $region20: #{decoder_c_forward.1} parent=11 // pred_fallthru
        _
      // Predicated region
      $region21: #{decoder_c_forward.1} parent=11 // pred_check
        %p168 = pneg %p100
      $region22: #{decoder_c_forward.1} parent=11 // pred_check_branch
        %170 = sbr.rel (%p168) target = $region24
      $region23: #{decoder_c_forward.1} parent=11 // pred_region
        _
      $region24: #{decoder_c_forward.1} parent=11 // pred_fallthru
        _
      // Predicated region
      $region25: #{decoder_c_forward.1} parent=11 // pred_check
        %p171 = pneg %p121
      $region26: #{decoder_c_forward.1} parent=11 // pred_check_branch
        %173 = sbr.rel (%p171) target = $region28
      $region27: #{decoder_c_forward.1} parent=11 // pred_region
        _
      $region28: #{decoder_c_forward.1} parent=11 // pred_fallthru
        _
    $region12: #{decoder_c_forward.1} parent=5 // pred_fallthru
      _
    %p174 = scmp.lt.s32.totalorder %s11, 2
    // Predicated region
    $region29: #{decoder_c_forward.1} parent=5 // pred_check
      %p175 = pneg %p174
    $region30: #{decoder_c_forward.1} parent=5 // pred_check_branch
      %177 = sbr.rel (%p175) target = $region32
    $region31: #{decoder_c_forward.1} parent=5 // pred_region
      // Predicated region
      $region33: #{decoder_c_forward.1} parent=31 // pred_check
        %p178 = pneg %p31
      $region34: #{decoder_c_forward.1} parent=31 // pred_check_branch
        %180 = sbr.rel (%p178) target = $region36
      $region35: #{decoder_c_forward.1} parent=31 // pred_region
        %s181 = smul.u32 16, %s11
        %p182 = scmp.lt.s32.totalorder %s181, 31
        %s183 = scalar_select %p182, %s181, 31
        %s184 = smul.addr %s183, 8
        %s185 = scalar_lea.vmem %s0, %s184
        %s186 = smul.u32 16, %s11
      $region36: #{decoder_c_forward.1} parent=31 // pred_fallthru
        _
    $region32: #{decoder_c_forward.1} parent=5 // pred_fallthru
      _
    %p187 = scmp.le.s32.totalorder 1, %s11
    %p188 = scmp.lt.s32.totalorder %s11, 3
    %p189 = pnand %p187, %p188
    %p190 = pneg %p189
    // Predicated region
    $region37: #{decoder_c_forward.1} parent=5 // pred_check
      _
    $region38: #{decoder_c_forward.1} parent=5 // pred_check_branch
      %192 = sbr.rel (%p189) target = $region40
    $region39: #{decoder_c_forward.1} parent=5 // pred_region
      %s193 = ssub.s32 %s11, 1
      %s194 = smul.u32 16, %s16
      %p195 = scmp.lt.s32.totalorder %s194, 31
      %s196 = scalar_select %p195, %s194, 31
      %s197 = smul.addr %s196, 8
      %s198 = scalar_lea.vmem %s0, %s197
      %p199 = pneg %p37
      %p200 = pneg %p34
      %p201 = pneg %p58
      %p202 = pneg %p55
      %p203 = pneg %p79
      %p204 = pneg %p76
      %p205 = pneg %p100
      %p206 = pneg %p97
      %p207 = pneg %p121
      %p208 = pneg %p118
      %p209 = pneg %p147
      %p210 = pneg %p144
      %s211 = smul.u32 16, %s16
      %p212 = scmp.lt.s32.totalorder %s211, 31
      %s213 = scalar_select %p212, %s211, 31
      %s214 = smul.addr %s213, 8
      %s215 = scalar_lea.vmem %s5, %s214
      %s216 = smul.u32 16, %s16
      %p217 = scmp.lt.s32.totalorder %s216, 31
      %s218 = scalar_select %p217, %s216, 31
      %s219 = smul.addr %s218, 8
      %s220 = scalar_lea.vmem %s0, %s219
      %s221 = smul.u32 16, %s16
      %s222 = smul.u32 16, %s16
      %p223 = scmp.lt.s32.totalorder %s222, 31
      %s224 = scalar_select %p223, %s222, 31
      %s225 = smul.addr %s224, 8
      %s226 = scalar_lea.vmem %s5, %s225
      %s227 = smul.u32 16, %s16
      %v229 = vld [vmem:[%s220] sm:$0xff]
      %v230 = vld [vmem:[%s220 + $0x8] sm:$0xff]
      %v231 = vld [vmem:[%s220 + $0x10] sm:$0xff]
      %v232 = vld [vmem:[%s220 + $0x18] sm:$0xff]
      %v233 = vld [vmem:[%s220 + $0x20] sm:$0xff]
      %v234 = vld [vmem:[%s220 + $0x28] sm:$0xff]
      %v235 = vld [vmem:[%s220 + $0x30] sm:$0xff]
      %v236 = vld [vmem:[%s220 + $0x38] sm:$0xff]
      %v237 = vld [vmem:[%s220 + $0x40] sm:$0xff]
      %v238 = vld [vmem:[%s220 + $0x48] sm:$0xff]
      %v239 = vld [vmem:[%s220 + $0x50] sm:$0xff]
      %v240 = vld [vmem:[%s220 + $0x58] sm:$0xff]
      %v241 = vld [vmem:[%s220 + $0x60] sm:$0xff]
      %v242 = vld [vmem:[%s220 + $0x68] sm:$0xff]
      %v243 = vld [vmem:[%s220 + $0x70] sm:$0xff]
      %v244 = vld [vmem:[%s220 + $0x78] sm:$0xff]
      %v245 = vpack.c.bf16 %v230, %v229
      %v246 = vpack.c.bf16 %v232, %v231
      %v247 = vpack.c.bf16 %v234, %v233
      %v248 = vpack.c.bf16 %v236, %v235
      %v249 = vpack.c.bf16 %v238, %v237
      %v250 = vpack.c.bf16 %v240, %v239
      %v251 = vpack.c.bf16 %v242, %v241
      %v252 = vpack.c.bf16 %v244, %v243
      %v253 = vld [vmem:[%s1] sm:$0xf]
      %v254 = vld [vmem:[%s1 + $0x4] sm:$0xf]
      %v255 = vld [vmem:[%s1 + $0x8] sm:$0xf]
      %v256 = vld [vmem:[%s1 + $0xc] sm:$0xf]
      %v257 = vld [vmem:[%s2] sm:$0xff]
      %v258 = vld [vmem:[%s2 + $0x8] sm:$0xff]
      %v259 = vld [vmem:[%s2 + $0x10] sm:$0xff]
      %v260 = vld [vmem:[%s2 + $0x18] sm:$0xff]
      %262 = vset.pattern.permute.xlu0 0
      %263 = vperm.xlu0 %262, %v257
      %v264 = vpop.permute.xlu0 %263
      %267 = vset.pattern.permute.xlu0 0
      %268 = vperm.xlu0 %267, %v258
      %v269 = vpop.permute.xlu0 %268
      %272 = vset.pattern.permute.xlu0 0
      %273 = vperm.xlu0 %272, %v259
      %v274 = vpop.permute.xlu0 %273
      %277 = vset.pattern.permute.xlu0 0
      %278 = vperm.xlu0 %277, %v260
      %v279 = vpop.permute.xlu0 %278
      %v285 = vunpack.c.l.b16 %v253
      %v286 = vunpack.c.l.b16 %v254
      %v287 = vunpack.c.l.b16 %v255
      %v288 = vunpack.c.l.b16 %v256
      %v289 = vpack.c.b16 %v286, %v285
      %v290 = vpack.c.b16 %v288, %v287
      %vm291 = vcmask 261120
      %v293 = vsel %vm291, %v289, 0
      %v296 = vsel %vm291, %v290, 0
      %v299 = vsel %vm291, %v245, 0
      %v302 = vsel %vm291, %v246, 0
      %v305 = vsel %vm291, %v247, 0
      %v308 = vsel %vm291, %v248, 0
      %v311 = vsel %vm291, %v249, 0
      %v314 = vsel %vm291, %v250, 0
      %v317 = vsel %vm291, %v251, 0
      %v320 = vsel %vm291, %v252, 0
      %322 = vmatprep.subr.bf16.mxu0 0
      %323 = vmatpush1.bf16.xpose.msra.mxu0 %v299
      %324 = vmatprep.subr.bf16.mxu0 0
      %325 = vmatpush1.bf16.xpose.msra.mxu0 %v302
      %326 = vmatprep.subr.bf16.mxu0 0
      %327 = vmatpush1.bf16.xpose.msra.mxu0 %v305
      %328 = vmatprep.subr.bf16.mxu0 0
      %329 = vmatpush1.bf16.xpose.msra.mxu0 %v308
      %330 = vmatprep.subr.bf16.mxu0 0
      %331 = vmatpush1.bf16.xpose.msra.mxu0 %v311
      %332 = vmatprep.subr.bf16.mxu0 0
      %333 = vmatpush1.bf16.xpose.msra.mxu0 %v314
      %334 = vmatprep.subr.bf16.mxu0 0
      %335 = vmatpush1.bf16.xpose.msra.mxu0 %v317
      %336 = vmatprep.subr.bf16.mxu0 0
      %337 = vmatpush1.bf16.xpose.msra.mxu0 %v320
      %338 = vmatprep.subr.bf16.mxu0 0
      %339 = vmatpush1.bf16.xpose.msra.mxu0 0
      %340 = vmatprep.subr.bf16.mxu0 0
      %341 = vmatpush1.bf16.xpose.msra.mxu0 0
      %342 = vmatprep.subr.bf16.mxu0 0
      %343 = vmatpush1.bf16.xpose.msra.mxu0 0
      %344 = vmatprep.subr.bf16.mxu0 0
      %345 = vmatpush1.bf16.xpose.msra.mxu0 0
      %346 = vmatprep.subr.bf16.mxu0 0
      %347 = vmatpush1.bf16.xpose.msra.mxu0 0
      %348 = vmatprep.subr.bf16.mxu0 0
      %349 = vmatpush1.bf16.xpose.msra.mxu0 0
      %350 = vmatprep.subr.bf16.mxu0 0
      %351 = vmatpush1.bf16.xpose.msra.mxu0 0
      %352 = vmatprep.subr.bf16.mxu0 0
      %353 = vmatpush1.bf16.xpose.msra.mxu0 0
      %354 = vmatprep.mubr.bf16.mxu0 0
      %355 = vmatmul.mubr.bf16.gmra.mrb[0].mxu0 %v293
      %v356 = vpop.f32.mrb[0].mxu0
      %v357 = vadd.f32 %v264, %v356
      %v358 = vpop.f32.mrb[0].mxu0
      %v359 = vpop.f32.mrb[0].mxu0
      %v360 = vadd.f32 %v269, %v359
      %v361 = vpop.f32.mrb[0].mxu0
      %362 = vmatprep.mubr.bf16.mxu0 0
      %363 = vmatmul.mubr.bf16.gmra.mrb[0].mxu0 %v296
      %v364 = vpop.f32.mrb[0].mxu0
      %v365 = vadd.f32 %v274, %v364
      %v366 = vpop.f32.mrb[0].mxu0
      %v367 = vpop.f32.mrb[0].mxu0
      %v368 = vadd.f32 %v279, %v367
      %v369 = vpop.f32.mrb[0].mxu0
      %370 = vdwg.mxu0
      %v371 = vtanh.pop %v357
      %v372 = vtanh.pop %v360
      %v373 = vtanh.pop %v365
      %v374 = vtanh.pop %v368
      %v375 = vsub.f32 %v357, %v371
      %v376 = vsub.f32 %v360, %v372
      %v377 = vsub.f32 %v365, %v373
      %v378 = vsub.f32 %v368, %v374
      %v379 = vpack.c.bf16 %v376, %v375
      %v380 = vpack.c.bf16 %v378, %v377
      %v381 = vld [vmem:[%s3] sm:$0xf]
      %v382 = vld [vmem:[%s3 + $0x4] sm:$0xf]
      %v383 = vld [vmem:[%s3 + $0x8] sm:$0xf]
      %v384 = vld [vmem:[%s3 + $0xc] sm:$0xf]
      %v385 = vld [vmem:[%s4] sm:$0x1]
      %v387 = vlaneseq
      %v388 = vshrl.u32 %v387, 7
      %v389 = vsub.s32 0, %v388
      %v390 = vrot.slane %v385, %v389
      %392 = vxpose.xlu0.c.b16.start [1/8] %v379, 128
      %393 = vxpose.xlu0.c.b16.cont [2/8] %v380, 128
      %394 = vxpose.xlu0.c.b16.cont [3/8] 0, 128
      %395 = vxpose.xlu0.c.b16.cont [4/8] 0, 128
      %396 = vxpose.xlu0.c.b16.cont [5/8] 0, 128
      %397 = vxpose.xlu0.c.b16.cont [6/8] 0, 128
      %398 = vxpose.xlu0.c.b16.cont [7/8] 0, 128
      %399 = vxpose.xlu0.c.b16.end [8/8] 0, 128
      %v400 = vpop.trf.xlu0
      %v401 = vpop.trf.xlu0
      %v402 = vpop.trf.xlu0
      %v403 = vpop.trf.xlu0
      %v404 = vpop.trf.xlu0
      %v405 = vpop.trf.xlu0
      %v406 = vpop.trf.xlu0
      %v407 = vpop.trf.xlu0
      %v412 = vunpack.c.l.b16 %v381
      %v413 = vunpack.c.l.b16 %v382
      %v414 = vunpack.c.l.b16 %v383
      %v415 = vunpack.c.l.b16 %v384
      %v416 = vpack.c.b16 %v413, %v412
      %v417 = vpack.c.b16 %v415, %v414
      %v421 = vsel %vm291, %v400, 0
      %v424 = vsel %vm291, %v401, 0
      %v427 = vsel %vm291, %v402, 0
      %v430 = vsel %vm291, %v403, 0
      %v433 = vsel %vm291, %v404, 0
      %v436 = vsel %vm291, %v405, 0
      %v439 = vsel %vm291, %v406, 0
      %v442 = vsel %vm291, %v407, 0
      %444 = vmatprep.subr.bf16.mxu0 0
      %445 = vmatpush1.bf16.msra.mxu0 %v416
      %446 = vmatprep.subr.bf16.mxu0 0
      %447 = vmatpush1.bf16.msra.mxu0 %v417
      %448 = vmatprep.subr.bf16.mxu0 0
      %449 = vmatpush1.bf16.msra.mxu0 0
      %450 = vmatprep.subr.bf16.mxu0 0
      %451 = vmatpush1.bf16.msra.mxu0 0
      %452 = vmatprep.subr.bf16.mxu0 0
      %453 = vmatpush1.bf16.msra.mxu0 0
      %454 = vmatprep.subr.bf16.mxu0 0
      %455 = vmatpush1.bf16.msra.mxu0 0
      %456 = vmatprep.subr.bf16.mxu0 0
      %457 = vmatpush1.bf16.msra.mxu0 0
      %458 = vmatprep.subr.bf16.mxu0 0
      %459 = vmatpush1.bf16.msra.mxu0 0
      %460 = vmatprep.subr.bf16.mxu0 0
      %461 = vmatpush1.bf16.msra.mxu0 0
      %462 = vmatprep.subr.bf16.mxu0 0
      %463 = vmatpush1.bf16.msra.mxu0 0
      %464 = vmatprep.subr.bf16.mxu0 0
      %465 = vmatpush1.bf16.msra.mxu0 0
      %466 = vmatprep.subr.bf16.mxu0 0
      %467 = vmatpush1.bf16.msra.mxu0 0
      %468 = vmatprep.subr.bf16.mxu0 0
      %469 = vmatpush1.bf16.msra.mxu0 0
      %470 = vmatprep.subr.bf16.mxu0 0
      %471 = vmatpush1.bf16.msra.mxu0 0
      %472 = vmatprep.subr.bf16.mxu0 0
      %473 = vmatpush1.bf16.msra.mxu0 0
      %474 = vmatprep.subr.bf16.mxu0 0
      %475 = vmatpush1.bf16.msra.mxu0 0
      %476 = vmatprep.mubr.bf16.mxu0 0
      %477 = vmatmul.mubr.bf16.gmra.mrb[0].mxu0 %v421
      %v478 = vpop.f32.mrb[0].mxu0
      %v479 = vadd.f32 %v390, %v478
      %v480 = vpop.f32.mrb[0].mxu0
      %v481 = vpop.f32.mrb[0].mxu0
      %v482 = vadd.f32 %v390, %v481
      %v483 = vpop.f32.mrb[0].mxu0
      %484 = vmatprep.mubr.bf16.mxu0 0
      %485 = vmatmul.mubr.bf16.gmra.mrb[0].mxu0 %v424
      %v486 = vpop.f32.mrb[0].mxu0
      %v487 = vadd.f32 %v390, %v486
      %v488 = vpop.f32.mrb[0].mxu0
      %v489 = vpop.f32.mrb[0].mxu0
      %v490 = vadd.f32 %v390, %v489
      %v491 = vpop.f32.mrb[0].mxu0
      %492 = vmatprep.mubr.bf16.mxu0 0
      %493 = vmatmul.mubr.bf16.gmra.mrb[0].mxu0 %v427
      %v494 = vpop.f32.mrb[0].mxu0
      %v495 = vadd.f32 %v390, %v494
      %v496 = vpop.f32.mrb[0].mxu0
      %v497 = vpop.f32.mrb[0].mxu0
      %v498 = vadd.f32 %v390, %v497
      %v499 = vpop.f32.mrb[0].mxu0
      %500 = vmatprep.mubr.bf16.mxu0 0
      %501 = vmatmul.mubr.bf16.gmra.mrb[0].mxu0 %v430
      %v502 = vpop.f32.mrb[0].mxu0
      %v503 = vadd.f32 %v390, %v502
      %v504 = vpop.f32.mrb[0].mxu0
      %v505 = vpop.f32.mrb[0].mxu0
      %v506 = vadd.f32 %v390, %v505
      %v507 = vpop.f32.mrb[0].mxu0
      %508 = vmatprep.mubr.bf16.mxu0 0
      %509 = vmatmul.mubr.bf16.gmra.mrb[0].mxu0 %v433
      %v510 = vpop.f32.mrb[0].mxu0
      %v511 = vadd.f32 %v390, %v510
      %v512 = vpop.f32.mrb[0].mxu0
      %v513 = vpop.f32.mrb[0].mxu0
      %v514 = vadd.f32 %v390, %v513
      %v515 = vpop.f32.mrb[0].mxu0
      %516 = vmatprep.mubr.bf16.mxu0 0
      %517 = vmatmul.mubr.bf16.gmra.mrb[0].mxu0 %v436
      %v518 = vpop.f32.mrb[0].mxu0
      %v519 = vadd.f32 %v390, %v518
      %v520 = vpop.f32.mrb[0].mxu0
      %v521 = vpop.f32.mrb[0].mxu0
      %v522 = vadd.f32 %v390, %v521
      %v523 = vpop.f32.mrb[0].mxu0
      %524 = vmatprep.mubr.bf16.mxu0 0
      %525 = vmatmul.mubr.bf16.gmra.mrb[0].mxu0 %v439
      %v526 = vpop.f32.mrb[0].mxu0
      %v527 = vadd.f32 %v390, %v526
      %v528 = vpop.f32.mrb[0].mxu0
      %v529 = vpop.f32.mrb[0].mxu0
      %v530 = vadd.f32 %v390, %v529
      %v531 = vpop.f32.mrb[0].mxu0
      %532 = vmatprep.mubr.bf16.mxu0 0
      %533 = vmatmul.mubr.bf16.gmra.mrb[0].mxu0 %v442
      %v534 = vpop.f32.mrb[0].mxu0
      %v535 = vadd.f32 %v390, %v534
      %v536 = vpop.f32.mrb[0].mxu0
      %v537 = vpop.f32.mrb[0].mxu0
      %v538 = vadd.f32 %v390, %v537
      %v539 = vpop.f32.mrb[0].mxu0
      %540 = vdwg.mxu0
      %541 = vst.msk [vmem:[%s226] sm:$0xff] %vm291, %v479
      %542 = vst.msk [vmem:[%s226 + $0x8] sm:$0xff] %vm291, %v482
      %543 = vst.msk [vmem:[%s226 + $0x10] sm:$0xff] %vm291, %v487
      %544 = vst.msk [vmem:[%s226 + $0x18] sm:$0xff] %vm291, %v490
      %545 = vst.msk [vmem:[%s226 + $0x20] sm:$0xff] %vm291, %v495
      %546 = vst.msk [vmem:[%s226 + $0x28] sm:$0xff] %vm291, %v498
      %547 = vst.msk [vmem:[%s226 + $0x30] sm:$0xff] %vm291, %v503
      %548 = vst.msk [vmem:[%s226 + $0x38] sm:$0xff] %vm291, %v506
      %549 = vst.msk [vmem:[%s226 + $0x40] sm:$0xff] %vm291, %v511
      %550 = vst.msk [vmem:[%s226 + $0x48] sm:$0xff] %vm291, %v514
      %551 = vst.msk [vmem:[%s226 + $0x50] sm:$0xff] %vm291, %v519
      %552 = vst.msk [vmem:[%s226 + $0x58] sm:$0xff] %vm291, %v522
      %553 = vst.msk [vmem:[%s226 + $0x60] sm:$0xff] %vm291, %v527
      %554 = vst.msk [vmem:[%s226 + $0x68] sm:$0xff] %vm291, %v530
      %555 = vst.msk [vmem:[%s226 + $0x70] sm:$0xff] %vm291, %v535
      %556 = vst.msk [vmem:[%s226 + $0x78] sm:$0xff] %vm291, %v538
      %s557 = smul.u32 16, %s16
      %p558 = scmp.lt.s32.totalorder %s557, 31
      %s559 = scalar_select %p558, %s557, 31
      %s560 = smul.addr %s559, 8
      %s561 = scalar_lea.vmem %s5, %s560
      // Predicated region
      $region41: #{decoder_c_forward.1} parent=39 // pred_check
        %p562 = pneg %p144
      $region42: #{decoder_c_forward.1} parent=39 // pred_check_branch
        %564 = sbr.rel (%p562) target = $region44
      $region43: #{decoder_c_forward.1} parent=39 // pred_region
        %s565 = smul.u32 16, %s16
      $region44: #{decoder_c_forward.1} parent=39 // pred_fallthru
        _
    $region40: #{decoder_c_forward.1} parent=5 // pred_fallthru
      _
    %p566 = scmp.le.s32.totalorder 2, %s11
    // Predicated region
    $region45: #{decoder_c_forward.1} parent=5 // pred_check
      %p567 = pneg %p566
    $region46: #{decoder_c_forward.1} parent=5 // pred_check_branch
      %569 = sbr.rel (%p567) target = $region48
    $region47: #{decoder_c_forward.1} parent=5 // pred_region
      %s570 = ssub.s32 %s11, 2
      // Predicated region
      $region49: #{decoder_c_forward.1} parent=47 // pred_check
        %p571 = pneg %p150
      $region50: #{decoder_c_forward.1} parent=47 // pred_check_branch
        %573 = sbr.rel (%p571) target = $region52
      $region51: #{decoder_c_forward.1} parent=47 // pred_region
        %s574 = smul.u32 16, %s17
        %p575 = scmp.lt.s32.totalorder %s574, 31
        %s576 = scalar_select %p575, %s574, 31
        %s577 = smul.addr %s576, 8
        %s578 = scalar_lea.vmem %s5, %s577
      $region52: #{decoder_c_forward.1} parent=47 // pred_fallthru
        _
    $region48: #{decoder_c_forward.1} parent=5 // pred_fallthru
      _
  $region6: #{decoder_c_forward.1} parent=0 // loop_footer
    %s15 = sadd.s32 1, %s11
  $region7: #{decoder_c_forward.1} parent=0 // loop_footer_branch
    %10 = sbr.rel target = $region3
  $region8: #{decoder_c_forward.1} parent=0 // loop_exit
    _

</llo_original>
